<compile_context>
chip_gen: v5e
topology: v5e:2x2
jax: 0.10.0
libtpu: 0.0.40
codegen_flags: <defaults>
</compile_context>

<pallas_src>
import jax
import jax.numpy as jnp
from jax.experimental import pallas as pl
from jax.experimental.pallas import tpu as pltpu


def _round_up(x, m):
    return ((x + m - 1) // m) * m


def _pick_divisor_tile(dim, target):
    """Largest multiple of 128 that divides `dim` (itself a multiple of 128)
    and is <= max(target, 128)."""
    best = 128
    t = 128
    limit = min(dim, max(target, 128))
    while t <= limit:
        if dim % t == 0:
            best = t
        t += 128
    return best


def _mlp_decoder_kernel(x_ref, w_ref, b_ref, o_ref):
    # bf16 x-tile (tm, tk) @ bf16 w-tile (tk, tn) -> f32 partial (tm, tn).
    partial = jnp.dot(x_ref[...], w_ref[...],
                      preferred_element_type=jnp.float32)

    k = pl.program_id(2)

    # First K step: write dot + bias directly (no zero-init, no acc scratch).
    @pl.when(k == 0)
    def _():
        o_ref[...] = partial + b_ref[...]

    # Later K steps: accumulate into the resident f32 output tile.
    @pl.when(k > 0)
    def _():
        o_ref[...] += partial


def prepare_mlp_decoder_params(weight, bias, *, tn_target=512, tk_target=512,
                               compute_dtype=jnp.bfloat16):
    """One-time parameter prep (hoisted out of the per-call hot path):
    pad to 128-aligned (Np, Kp), transpose to MXU-native (K, N) layout, cast
    the weight to bf16 (halves weight HBM traffic), keep the bias in f32."""
    E, F = weight.shape
    assert bias.shape == (E,)
    Kp = _round_up(F, 128)
    Np = _round_up(E, 128)
    tk = _pick_divisor_tile(Kp, tk_target)
    tn = _pick_divisor_tile(Np, tn_target)
    w_kn = jnp.pad(weight, ((0, Np - E), (0, Kp - F))).T.astype(compute_dtype)
    b_p = jnp.pad(bias, ((0, Np - E),)).astype(jnp.float32).reshape(1, Np)
    return dict(w_kn=w_kn, b=b_p, E=E, F=F, Kp=Kp, Np=Np, tk=tk, tn=tn,
                compute_dtype=compute_dtype)


def mlp_decoder_forward(x, params, *, tm_target=512):
    """y = x @ W.T + b with PyTorch nn.Linear semantics, using params prepared
    once by prepare_mlp_decoder_params."""
    w_kn, b_p = params["w_kn"], params["b"]
    E, F = params["E"], params["F"]
    Kp, Np = params["Kp"], params["Np"]
    tk, tn = params["tk"], params["tn"]
    cdt = params["compute_dtype"]

    bz = x.shape[0]
    assert x.shape[-1] == F
    x2 = x.reshape(-1, F)
    M = x2.shape[0]

    # tm covers the whole (8-rounded) batch by default -> weight streamed once.
    tm = min(tm_target, _round_up(M, 8))
    Mp = _round_up(M, tm)

    # v7x megacore: ensure >= 2 parallel (i, j) tiles when the padded shapes
    # allow it. Split N first (keeps weight traffic at one pass), then M.
    if (Mp // tm) * (Np // tn) == 1:
        if Np >= 256:
            tn = _pick_divisor_tile(Np, Np // 2)
        elif Mp >= 16:
            tm = _round_up(Mp // 2, 8)
            Mp = _round_up(M, tm)

    # Per-call x prep only (small): cast to bf16, pad to tile boundaries.
    xp = jnp.pad(x2.astype(cdt), ((0, Mp - M), (0, Kp - F)))

    grid = (Mp // tm, Np // tn, Kp // tk)

    out = pl.pallas_call(
        _mlp_decoder_kernel,
        out_shape=jax.ShapeDtypeStruct((Mp, Np), jnp.float32),
        grid_spec=pltpu.PrefetchScalarGridSpec(
            num_scalar_prefetch=0,
            grid=grid,
            in_specs=[
                pl.BlockSpec((tm, tk), lambda i, j, k: (i, k)),   # x   (bf16)
                pl.BlockSpec((tk, tn), lambda i, j, k: (k, j)),   # W   (K,N) bf16
                pl.BlockSpec((1, tn), lambda i, j, k: (0, j)),    # bias (f32)
            ],
            out_specs=pl.BlockSpec((tm, tn), lambda i, j, k: (i, j)),
        ),
        compiler_params=pltpu.CompilerParams(
            dimension_semantics=("parallel", "parallel", "arbitrary")),
    )(xp, w_kn, b_p)

    # x.squeeze().reshape(bz, emb_shape) — identity for a 2-D (B, E) result.
    return out[:M, :E].astype(x.dtype).reshape(bz, E)


def make_mlp_decoder(weight, bias, **prep_kwargs):
    """Prepare static params once; returns a forward(x) closure."""
    params = prepare_mlp_decoder_params(weight, bias, **prep_kwargs)

    def forward(x):
        return mlp_decoder_forward(x, params)

    return forward


if __name__ == "__main__":
    key = jax.random.PRNGKey(0)

    # --- Small shapes consistent with the module: batch=4, input=32, emb=16 ---
    B, F, E = 4, 32, 16
    kx, kw, kb = jax.random.split(key, 3)
    x = jax.random.normal(kx, (B, F), dtype=jnp.float32)
    bound = 1.0 / (F ** 0.5)           # mimic nn.Linear uniform init bounds
    weight = jax.random.uniform(kw, (E, F), minval=-bound, maxval=bound,
                                dtype=jnp.float32)
    bias = jax.random.uniform(kb, (E,), minval=-bound, maxval=bound,
                              dtype=jnp.float32)

    decoder = make_mlp_decoder(weight, bias)
    y = decoder(x)
    jax.block_until_ready(y)
    y_ref = x @ weight.T + bias
    assert y.shape == (B, E)
    # bf16 MXU operands with f32 accumulation -> modest tolerance vs f32 ref.
    assert jnp.allclose(y, y_ref, atol=5e-2, rtol=5e-2), \
        float(jnp.max(jnp.abs(y - y_ref)))

    # --- Larger multi-tile sanity check: multi-K accumulation (Kp=1024 ->
    # two tk=512 steps), exact-divisor tiling, megacore >=2-parallel-tile split.
    B2, F2, E2 = 200, 1024, 384
    kx2, kw2, kb2 = jax.random.split(jax.random.PRNGKey(1), 3)
    x2 = jax.random.normal(kx2, (B2, F2), dtype=jnp.float32)
    bound2 = 1.0 / (F2 ** 0.5)
    w2 = jax.random.uniform(kw2, (E2, F2), minval=-bound2, maxval=bound2,
                            dtype=jnp.float32)
    b2 = jax.random.uniform(kb2, (E2,), minval=-bound2, maxval=bound2,
                            dtype=jnp.float32)
    decoder2 = make_mlp_decoder(w2, b2)
    y2 = decoder2(x2)
    jax.block_until_ready(y2)
    y2_ref = x2 @ w2.T + b2
    assert y2.shape == (B2, E2)
    assert jnp.allclose(y2, y2_ref, atol=5e-2, rtol=5e-2), \
        float(jnp.max(jnp.abs(y2 - y2_ref)))

    print("KERNEL_OK")
</pallas_src>

<mosaic_0001>
module attributes {stable_mosaic.version = 11 : i64} {
  func.func @_mlp_decoder_kernel(%arg0: i32, %arg1: i32, %arg2: i32, %arg3: memref<8x128xbf16, #tpu.memory_space<vmem>>, %arg4: memref<128x128xbf16, #tpu.memory_space<vmem>>, %arg5: memref<1x128xf32, #tpu.memory_space<vmem>>, %arg6: memref<8x128xf32, #tpu.memory_space<vmem>>) attributes {dimension_semantics = [#tpu.dimension_semantics<parallel>, #tpu.dimension_semantics<parallel>, #tpu.dimension_semantics<arbitrary>], iteration_bounds = array<i64: 1, 1, 1>, scalar_prefetch = 0 : i64, scratch_operands = 0 : i64, tpu.core_type = #tpu.core_type<tc>, window_params = [{transform_indices = @transform_0, window_bounds = array<i64: 8, 128>}, {transform_indices = @transform_1, window_bounds = array<i64: 128, 128>}, {transform_indices = @transform_2, window_bounds = array<i64: 1, 128>}, {transform_indices = @transform_3, window_bounds = array<i64: 8, 128>}]} {
    %c0 = arith.constant 0 : index
    %c0_0 = arith.constant 0 : index
    %0 = vector.load %arg3[%c0, %c0_0] : memref<8x128xbf16, #tpu.memory_space<vmem>>, vector<8x128xbf16>
    %c0_1 = arith.constant 0 : index
    %c0_2 = arith.constant 0 : index
    %1 = vector.load %arg4[%c0_1, %c0_2] : memref<128x128xbf16, #tpu.memory_space<vmem>>, vector<128x128xbf16>
    %cst = arith.constant dense<0.000000e+00> : vector<8x128xf32>
    %2 = tpu.matmul %0, %1, %cst {dimension_numbers = #tpu.dot_dimension_numbers<[1], [0], [0], [1], [0, 0, 1, 1], [], []>} : vector<8x128xbf16>, vector<128x128xbf16>, vector<8x128xf32> -> vector<8x128xf32>
    %c0_i32 = arith.constant 0 : i32
    %3 = arith.cmpi eq, %arg2, %c0_i32 : i32
    %4 = arith.extui %3 : i1 to i32
    %c0_i32_3 = arith.constant 0 : i32
    %5 = arith.cmpi ne, %4, %c0_i32_3 : i32
    scf.if %5 {
      %c0_6 = arith.constant 0 : index
      %c0_7 = arith.constant 0 : index
      %9 = vector.load %arg5[%c0_6, %c0_7] : memref<1x128xf32, #tpu.memory_space<vmem>>, vector<1x128xf32>
      %10 = vector.broadcast %9 : vector<1x128xf32> to vector<8x128xf32>
      %11 = arith.addf %2, %10 : vector<8x128xf32>
      %c0_8 = arith.constant 0 : index
      %c0_9 = arith.constant 0 : index
      %12 = vector.load %arg6[%c0_8, %c0_9] : memref<8x128xf32, #tpu.memory_space<vmem>>, vector<8x128xf32>
      tpu.vector_store %arg6[%c0_8, %c0_9], %11 {strides = array<i32>} : memref<8x128xf32, #tpu.memory_space<vmem>>, vector<8x128xf32>,
    } else {
    }
    %c0_i32_4 = arith.constant 0 : i32
    %6 = arith.cmpi sgt, %arg2, %c0_i32_4 : i32
    %7 = arith.extui %6 : i1 to i32
    %c0_i32_5 = arith.constant 0 : i32
    %8 = arith.cmpi ne, %7, %c0_i32_5 : i32
    scf.if %8 {
      %c0_6 = arith.constant 0 : index
      %c0_7 = arith.constant 0 : index
      %9 = vector.load %arg6[%c0_6, %c0_7] : memref<8x128xf32, #tpu.memory_space<vmem>>, vector<8x128xf32>
      %10 = arith.addf %9, %2 : vector<8x128xf32>
      %c0_8 = arith.constant 0 : index
      %c0_9 = arith.constant 0 : index
      %11 = vector.load %arg6[%c0_8, %c0_9] : memref<8x128xf32, #tpu.memory_space<vmem>>, vector<8x128xf32>
      tpu.vector_store %arg6[%c0_8, %c0_9], %10 {strides = array<i32>} : memref<8x128xf32, #tpu.memory_space<vmem>>, vector<8x128xf32>,
    } else {
    }
    return
  }
  func.func @transform_0(%arg0: i32, %arg1: i32, %arg2: i32) -> (i32, i32) {
    %c0_i32 = arith.constant 0 : i32
    return %arg0, %arg2 : i32, i32
  }
  func.func @transform_1(%arg0: i32, %arg1: i32, %arg2: i32) -> (i32, i32) {
    %c0_i32 = arith.constant 0 : i32
    return %arg2, %arg1 : i32, i32
  }
  func.func @transform_2(%arg0: i32, %arg1: i32, %arg2: i32) -> (i32, i32) {
    %c0_i32 = arith.constant 0 : i32
    %c0_i32_0 = arith.constant 0 : i32
    return %c0_i32, %arg1 : i32, i32
  }
  func.func @transform_3(%arg0: i32, %arg1: i32, %arg2: i32) -> (i32, i32) {
    %c0_i32 = arith.constant 0 : i32
    return %arg0, %arg1 : i32, i32
  }
}

</mosaic_0001>

<llo_original>
// kernel: tpu_custom_call.1
$region0: #{tpu_custom_call.1}
  #allocation0 [shape = 'u32[]', space=smem, size = 0x4, offset = 0x4, fixed_abs, tag = 'smem constant byte address 0x4 - core index']
  #allocation1 [shape = 'u32[72,128]{1,0:T(1,128)}', space=vmem, size = 0x9000, scoped, tag = 'internal scratch']
  %s0 = inlined_call_operand.hbm [shape: bf16[8,128], index: 0, kind: input, shape index: {}]
  %s1 = inlined_call_operand.hbm [shape: bf16[128,128], index: 1, kind: input, shape index: {}]
  %s2 = inlined_call_operand.vmem [shape: f32[1,128], index: 2, kind: input, shape index: {}]
  %s3 = inlined_call_operand.hbm [shape: f32[8,128], index: 3, kind: output, shape index: {}]
  %s4 = sld [smem:[#allocation0]]
  $region38: #{tpu_custom_call.1} parent=0
    _
  %s6 = ssub.s32 1, %s4
  %s7 = scalar_select 0, %s6, %s4
  $region1: #{tpu_custom_call.1} parent=0
    #allocation2 [shape = 'u8[2048]{0}', space=vmem, size = 0x800, scoped, tag = 'input window, operand 0, single buffered']
    #allocation3 [shape = 's32[1]{0}', space=sflag, size = 0x4, scoped, tag = 'scoped memory for tpu_custom_call.1']
    #allocation4 [shape = 's32[1]{0}', space=sflag, size = 0x4, scoped, tag = 'scoped memory for tpu_custom_call.1']
    #allocation5 [shape = 'u8[32768]{0}', space=vmem, size = 0x8000, scoped, tag = 'input window, operand 1, single buffered']
    #allocation6 [shape = 's32[1]{0}', space=sflag, size = 0x4, scoped, tag = 'scoped memory for tpu_custom_call.1']
    #allocation7 [shape = 'u8[4096]{0}', space=vmem, size = 0x1000, scoped, tag = 'output window, operand 0, single buffered']
    %8 = vsyncpa [#allocation3], 0
    %9 = vsyncpa [#allocation6], 0
    %10 = vsyncpa [#allocation4], 0
    // Predicated region
    $region2: #{tpu_custom_call.1} parent=1 // pred_check
      _
    $region3: #{tpu_custom_call.1} parent=1 // pred_check_branch
      %12 = sbr.rel (0) target = $region5
    $region4: #{tpu_custom_call.1} parent=1 // pred_region
      %14 = vsyncadd [#allocation3], 0
      %s16 = sshll.u32 %s0, 4
      %s17 = int_to_ptr.hbm [resolvable:$true] %s16
      %s18 = sshll.u32 [#allocation2], 4
      %s19 = int_to_ptr.vmem [resolvable:$true] %s18
      %21 = dma.hbm_to_vmem [thread:$0]  %s17, 64, %s19, [#allocation3]
    $region5: #{tpu_custom_call.1} parent=1 // pred_fallthru
      _
    // Predicated region
    $region6: #{tpu_custom_call.1} parent=1 // pred_check
      _
    $region7: #{tpu_custom_call.1} parent=1 // pred_check_branch
      %23 = sbr.rel (0) target = $region9
    $region8: #{tpu_custom_call.1} parent=1 // pred_region
      %25 = vsyncadd [#allocation6], 0
      %s26 = sshll.u32 %s1, 4
      %s27 = int_to_ptr.hbm [resolvable:$true] %s26
      %s28 = sshll.u32 [#allocation5], 4
      %s29 = int_to_ptr.vmem [resolvable:$true] %s28
      %34 = dma.hbm_to_vmem [thread:$0]  %s27, 1024, %s29, [#allocation6], 64, 64, 4
    $region9: #{tpu_custom_call.1} parent=1 // pred_fallthru
      _
    // Predicated region
    $region10: #{tpu_custom_call.1} parent=1 // pred_check
      _
    $region11: #{tpu_custom_call.1} parent=1 // pred_check_branch
      %36 = sbr.rel (0) target = $region13
    $region12: #{tpu_custom_call.1} parent=1 // pred_region
      _
    $region13: #{tpu_custom_call.1} parent=1 // pred_fallthru
      _
    // Predicated region
    $region14: #{tpu_custom_call.1} parent=1 // pred_check
      _
    $region15: #{tpu_custom_call.1} parent=1 // pred_check_branch
      %38 = sbr.rel (0) target = $region17
    $region16: #{tpu_custom_call.1} parent=1 // pred_region
      %40 = dma.done [#allocation3], 64
    $region17: #{tpu_custom_call.1} parent=1 // pred_fallthru
      _
    // Predicated region
    $region18: #{tpu_custom_call.1} parent=1 // pred_check
      _
    $region19: #{tpu_custom_call.1} parent=1 // pred_check_branch
      %42 = sbr.rel (0) target = $region21
    $region20: #{tpu_custom_call.1} parent=1 // pred_region
      %44 = dma.done [#allocation6], 1024
    $region21: #{tpu_custom_call.1} parent=1 // pred_fallthru
      _
    %v45 = vld [vmem:[#allocation2] sm:$0xf]
    %v46 = vld [vmem:[#allocation5] sm:$0xf]
    %v47 = vld [vmem:[#allocation5 + $0x4] sm:$0xf]
    %v48 = vld [vmem:[#allocation5 + $0x8] sm:$0xf]
    %v49 = vld [vmem:[#allocation5 + $0xc] sm:$0xf]
    %v50 = vld [vmem:[#allocation5 + $0x10] sm:$0xf]
    %v51 = vld [vmem:[#allocation5 + $0x14] sm:$0xf]
    %v52 = vld [vmem:[#allocation5 + $0x18] sm:$0xf]
    %v53 = vld [vmem:[#allocation5 + $0x1c] sm:$0xf]
    %v54 = vld [vmem:[#allocation5 + $0x20] sm:$0xf]
    %v55 = vld [vmem:[#allocation5 + $0x24] sm:$0xf]
    %v56 = vld [vmem:[#allocation5 + $0x28] sm:$0xf]
    %v57 = vld [vmem:[#allocation5 + $0x2c] sm:$0xf]
    %v58 = vld [vmem:[#allocation5 + $0x30] sm:$0xf]
    %v59 = vld [vmem:[#allocation5 + $0x34] sm:$0xf]
    %v60 = vld [vmem:[#allocation5 + $0x38] sm:$0xf]
    %v61 = vld [vmem:[#allocation5 + $0x3c] sm:$0xf]
    %v78 = vunpack.c.l.b16 %v46
    %v79 = vunpack.c.l.b16 %v47
    %v80 = vunpack.c.l.b16 %v48
    %v81 = vunpack.c.l.b16 %v49
    %v82 = vunpack.c.l.b16 %v50
    %v83 = vunpack.c.l.b16 %v51
    %v84 = vunpack.c.l.b16 %v52
    %v85 = vunpack.c.l.b16 %v53
    %v86 = vunpack.c.l.b16 %v54
    %v87 = vunpack.c.l.b16 %v55
    %v88 = vunpack.c.l.b16 %v56
    %v89 = vunpack.c.l.b16 %v57
    %v90 = vunpack.c.l.b16 %v58
    %v91 = vunpack.c.l.b16 %v59
    %v92 = vunpack.c.l.b16 %v60
    %v93 = vunpack.c.l.b16 %v61
    %v94 = vpack.c.b16 %v79, %v78
    %v95 = vpack.c.b16 %v81, %v80
    %v96 = vpack.c.b16 %v83, %v82
    %v97 = vpack.c.b16 %v85, %v84
    %v98 = vpack.c.b16 %v87, %v86
    %v99 = vpack.c.b16 %v89, %v88
    %v100 = vpack.c.b16 %v91, %v90
    %v101 = vpack.c.b16 %v93, %v92
    %110 = vmatpush.bf16.msra.mxu0 %v101
    %111 = vmatpush.bf16.msra.mxu0 %v100
    %112 = vmatpush.bf16.msra.mxu0 %v99
    %113 = vmatpush.bf16.msra.mxu0 %v98
    %114 = vmatpush.bf16.msra.mxu0 %v97
    %115 = vmatpush.bf16.msra.mxu0 %v96
    %116 = vmatpush.bf16.msra.mxu0 %v95
    %117 = vmatpush.bf16.msra.mxu0 %v94
    %118 = vmatmul.bf16.gmra.mxu0 %v45
    %v119 = vpop.f32.mrf.mxu0
    %v120 = vadd.f32 0.0, %v119
    %v121 = vpop.f32.mrf.mxu0
    %122 = vdwg.mxu0
    %p123 = scmp.eq.s32.totalorder 0, 0
    // Predicated region
    $region22: #{tpu_custom_call.1} parent=1 // pred_check
      %p124 = pneg %p123
    $region23: #{tpu_custom_call.1} parent=1 // pred_check_branch
      %126 = sbr.rel (%p124) target = $region25
    $region24: #{tpu_custom_call.1} parent=1 // pred_region
      %v127 = vld [vmem:[%s2] sm:$0x1]
      %v129 = vperm.slane %v127, 0
      %v131 = vadd.f32 %v120, %v129
      %132 = vst [vmem:[#allocation7] sm:$0xff] %v131
    $region25: #{tpu_custom_call.1} parent=1 // pred_fallthru
      _
    %p133 = scmp.gt.s32.totalorder 0, 0
    // Predicated region
    $region26: #{tpu_custom_call.1} parent=1 // pred_check
      %p134 = pneg %p133
    $region27: #{tpu_custom_call.1} parent=1 // pred_check_branch
      %136 = sbr.rel (%p134) target = $region29
    $region28: #{tpu_custom_call.1} parent=1 // pred_region
      %v137 = vld [vmem:[#allocation7] sm:$0xff]
      %v138 = vadd.f32 %v137, %v120
      %139 = vst [vmem:[#allocation7] sm:$0xff] %v138
    $region29: #{tpu_custom_call.1} parent=1 // pred_fallthru
      _
    // Predicated region
    $region30: #{tpu_custom_call.1} parent=1 // pred_check
      _
    $region31: #{tpu_custom_call.1} parent=1 // pred_check_branch
      %141 = sbr.rel (0) target = $region33
    $region32: #{tpu_custom_call.1} parent=1 // pred_region
      %143 = vsyncadd [#allocation4], 0
      %s145 = sshll.u32 [#allocation7], 4
      %s146 = int_to_ptr.vmem [resolvable:$true] %s145
      %s147 = sshll.u32 %s3, 4
      %s148 = int_to_ptr.hbm [resolvable:$true] %s147
      %150 = dma.vmem_to_hbm [thread:$0]  %s146, 128, %s148, [#allocation4]
    $region33: #{tpu_custom_call.1} parent=1 // pred_fallthru
      _
    // Predicated region
    $region34: #{tpu_custom_call.1} parent=1 // pred_check
      _
    $region35: #{tpu_custom_call.1} parent=1 // pred_check_branch
      %152 = sbr.rel (0) target = $region37
    $region36: #{tpu_custom_call.1} parent=1 // pred_region
      %154 = dma.done [#allocation4], 128
    $region37: #{tpu_custom_call.1} parent=1 // pred_fallthru
      _
    %155 = vsyncpa [#allocation3], 1
    %156 = vsyncpa [#allocation6], 1
    %157 = vsyncpa [#allocation4], 1

</llo_original>
